<compile_context>
chip_gen: v6e
topology: v6e:2x2x1
jax: 0.10.0
libtpu: 0.0.40
codegen_flags: <defaults>
</compile_context>

<pallas_src>
import jax
import jax.numpy as jnp
from jax import lax
from jax.experimental import pallas as pl
from jax.experimental.pallas import tpu as pltpu


def _round_up(a: int, b: int) -> int:
    return ((a + b - 1) // b) * b


def _pick_tile(dim: int, max_tile: int, align: int) -> int:
    """Pick a tile that is a multiple of `align`, <= max_tile, and (when
    possible) divides the padded dim so no wrapper padding is needed."""
    dpad = _round_up(dim, align)
    if dpad <= max_tile:
        return dpad
    t = (max_tile // align) * align
    best = align
    while t >= align:
        if dpad % t == 0:
            best = t
            break
        t -= align
    if best >= max(align, max_tile // 4):
        return best
    # Padding waste is cheaper than tiny tiles: accept the pad.
    return (max_tile // align) * align


def _vmem_budget() -> int:
    cap = 64 << 20  # conservative fallback (v7x per-core VMEM)
    try:
        info = pltpu.get_tpu_info()
        cap = int(getattr(info, "vmem_capacity_bytes", cap))
    except Exception:
        pass
    return int(min((cap * 3) // 4, 96 << 20))


def _footprint(tm, tn, tk, isz_x, isz_w, isz_o, with_scratch) -> int:
    # Double-buffered inputs/outputs + (optional) f32 accumulator + bias strip.
    f = 2 * (tm * tk * isz_x + tn * tk * isz_w) + 2 * tm * tn * isz_o
    f += 2 * tn * isz_o
    if with_scratch:
        f += tm * tn * 4
    return f


# --------------------------- kernel bodies ---------------------------------

def _dot_xwT(x_ref, w_ref):
    # x tile: (tm, tk); W tile: (tn, tk) in PyTorch (out, in) layout.
    # Contract dim 1 of x with dim 1 of W -> (tm, tn); f32 MXU accumulation.
    return lax.dot_general(
        x_ref[...],
        w_ref[...],
        dimension_numbers=(((1,), (1,)), ((), ())),
        preferred_element_type=jnp.float32,
    )


def _linear_kernel_single_k(x_ref, w_ref, b_ref, o_ref):
    # Whole K in one step: no accumulator, no control flow.
    acc = _dot_xwT(x_ref, w_ref)
    o_ref[...] = (acc + b_ref[...].astype(jnp.float32)).astype(o_ref.dtype)


def _linear_kernel_acc_out(x_ref, w_ref, b_ref, o_ref):
    # K-accumulation directly into the resident f32 output block.
    k = pl.program_id(2)
    part = _dot_xwT(x_ref, w_ref)

    @pl.when(k == 0)
    def _():
        o_ref[...] = part

    @pl.when(k > 0)
    def _():
        o_ref[...] += part

    @pl.when(k == pl.num_programs(2) - 1)
    def _():
        o_ref[...] += b_ref[...].astype(jnp.float32)


def _linear_kernel_acc_scratch(x_ref, w_ref, b_ref, o_ref, acc_ref):
    # Narrow output dtype: accumulate in a f32 VMEM scratch, cast once.
    k = pl.program_id(2)
    part = _dot_xwT(x_ref, w_ref)

    @pl.when(k == 0)
    def _():
        acc_ref[...] = part

    @pl.when(k > 0)
    def _():
        acc_ref[...] += part

    @pl.when(k == pl.num_programs(2) - 1)
    def _():
        o_ref[...] = (acc_ref[...] + b_ref[...].astype(jnp.float32)).astype(o_ref.dtype)


# ------------------------------ wrapper -------------------------------------

def gated_linear(x, weight, bias=None, *, tm=512, tn=512, tk=1024):
    """Pallas implementation of GatedLinear.forward (gate=None case).

    x:      (B, in_features)
    weight: (out_features, in_features)   -- PyTorch nn.Linear convention
    bias:   (out_features,) or None
    returns (B, out_features), dtype of x.
    """
    B, in_f = x.shape
    out_f, in_f2 = weight.shape
    assert in_f == in_f2, "weight/in_features mismatch"

    out_dtype = x.dtype
    if bias is None:
        bias = jnp.zeros((out_f,), dtype=out_dtype)

    isz_x = jnp.dtype(x.dtype).itemsize
    isz_w = jnp.dtype(weight.dtype).itemsize
    isz_o = jnp.dtype(out_dtype).itemsize
    sub = max(8, 32 // isz_x)  # dtype-aware sublane minimum for the M tile

    tm = _pick_tile(B, tm, sub)
    tn = _pick_tile(out_f, tn, 128)
    tk = _pick_tile(in_f, tk, 128)

    # Keep the double-buffered footprint under the device VMEM budget
    # (v7x has half the VMEM of v5e/v6e).
    budget = _vmem_budget()
    while _footprint(tm, tn, tk, isz_x, isz_w, isz_o, True) > budget:
        if tk > 128 and tk >= tn and tk >= tm:
            tk = max(128, _round_up(tk // 2, 128))
        elif tn > 128 and tn >= tm:
            tn = max(128, _round_up(tn // 2, 128))
        elif tm > sub:
            tm = max(sub, _round_up(tm // 2, sub))
        else:
            break

    Mp, Np, Kp = _round_up(B, tm), _round_up(out_f, tn), _round_up(in_f, tk)

    # Pad only when the divisor-aware tiles could not avoid it (zero padding
    # is exact for the matmul; padded rows/cols are sliced off afterwards).
    xp = x if (Mp == B and Kp == in_f) else jnp.pad(x, ((0, Mp - B), (0, Kp - in_f)))
    wp = weight if (Np == out_f and Kp == in_f) else jnp.pad(
        weight, ((0, Np - out_f), (0, Kp - in_f)))
    bp = (bias if Np == out_f else jnp.pad(bias, (0, Np - out_f))).reshape(1, Np)

    grid = (Mp // tm, Np // tn, Kp // tk)
    gm, gn, kg = grid

    if kg == 1:
        kernel = _linear_kernel_single_k
        scratch = []
        with_scratch = False
    elif out_dtype == jnp.float32:
        kernel = _linear_kernel_acc_out
        scratch = []
        with_scratch = False
    else:
        kernel = _linear_kernel_acc_scratch
        scratch = [pltpu.VMEM((tm, tn), jnp.float32)]
        with_scratch = True

    fp = _footprint(tm, tn, tk, isz_x, isz_w, isz_o, with_scratch)
    vmem_limit = int(min(budget, max(fp + (2 << 20), 16 << 20)))

    # bytes_accessed includes HBM re-reads: x streamed gn times, W gm times.
    cost = pl.CostEstimate(
        flops=2 * Mp * Np * Kp,
        transcendentals=0,
        bytes_accessed=(Mp * Kp * gn) * isz_x + (Np * Kp * gm) * isz_w
        + (Mp * Np) * isz_o + Np * isz_o,
    )

    out = pl.pallas_call(
        kernel,
        out_shape=jax.ShapeDtypeStruct((Mp, Np), out_dtype),
        grid_spec=pltpu.PrefetchScalarGridSpec(
            num_scalar_prefetch=0,
            grid=grid,
            in_specs=[
                pl.BlockSpec((tm, tk), lambda i, j, k: (i, k)),   # x
                pl.BlockSpec((tn, tk), lambda i, j, k: (j, k)),   # W (out, in)
                pl.BlockSpec((1, tn), lambda i, j, k: (0, j)),    # bias strip
            ],
            out_specs=pl.BlockSpec((tm, tn), lambda i, j, k: (i, j)),
            scratch_shapes=scratch,
        ),
        compiler_params=pltpu.CompilerParams(
            dimension_semantics=("parallel", "parallel", "arbitrary"),
            vmem_limit_bytes=vmem_limit,
        ),
        cost_estimate=cost,
    )(xp, wp, bp)

    return out[:B, :out_f]


def _ref(x, weight, bias):
    y = (x.astype(jnp.float32) @ weight.astype(jnp.float32).T
         + bias.astype(jnp.float32))
    return y.astype(x.dtype)


if __name__ == "__main__":
    key = jax.random.PRNGKey(0)

    # --- 1) Small shapes consistent with the module: batch=8, in=32, out=16 --
    B, in_features, out_features = 8, 32, 16
    kx, kw, kb, key = jax.random.split(key, 4)
    x = jax.random.normal(kx, (B, in_features), dtype=jnp.float32)
    bound = 1.0 / (in_features ** 0.5)
    w = jax.random.uniform(kw, (out_features, in_features),
                           minval=-bound, maxval=bound, dtype=jnp.float32)
    b = jax.random.uniform(kb, (out_features,),
                           minval=-bound, maxval=bound, dtype=jnp.float32)
    y = jax.block_until_ready(gated_linear(x, w, b))
    assert y.shape == (B, out_features)
    assert jnp.allclose(y, _ref(x, w, b), atol=1e-5, rtol=1e-5)

    # --- 2) Realistic layer, single-step fast path with zero padding ---------
    B2, in2, out2 = 32, 1024, 384
    kx2, kw2, kb2, key = jax.random.split(key, 4)
    x2 = jax.random.normal(kx2, (B2, in2), dtype=jnp.float32)
    bd2 = 1.0 / (in2 ** 0.5)
    w2 = jax.random.uniform(kw2, (out2, in2), minval=-bd2, maxval=bd2,
                            dtype=jnp.float32)
    b2 = jax.random.uniform(kb2, (out2,), minval=-bd2, maxval=bd2,
                            dtype=jnp.float32)
    y2 = jax.block_until_ready(gated_linear(x2, w2, b2))
    assert y2.shape == (B2, out2)
    assert jnp.allclose(y2, _ref(x2, w2, b2), atol=2e-4, rtol=2e-4)

    # --- 3) Multi-tile N and K (f32 accumulate-into-output path) -------------
    B3, in3, out3 = 64, 2560, 1536
    kx3, kw3, kb3, key = jax.random.split(key, 4)
    x3 = jax.random.normal(kx3, (B3, in3), dtype=jnp.float32)
    bd3 = 1.0 / (in3 ** 0.5)
    w3 = jax.random.uniform(kw3, (out3, in3), minval=-bd3, maxval=bd3,
                            dtype=jnp.float32)
    b3 = jax.random.uniform(kb3, (out3,), minval=-bd3, maxval=bd3,
                            dtype=jnp.float32)
    y3 = jax.block_until_ready(gated_linear(x3, w3, b3))
    assert y3.shape == (B3, out3)
    assert jnp.allclose(y3, _ref(x3, w3, b3), atol=1e-3, rtol=1e-3)

    # --- 4) bf16 path (scratch f32 accumulator, dtype-aware sublane clamp) ---
    B4, in4, out4 = 32, 2560, 1024
    kx4, kw4, kb4, key = jax.random.split(key, 4)
    x4 = jax.random.normal(kx4, (B4, in4), dtype=jnp.float32).astype(jnp.bfloat16)
    bd4 = 1.0 / (in4 ** 0.5)
    w4 = jax.random.uniform(kw4, (out4, in4), minval=-bd4, maxval=bd4,
                            dtype=jnp.float32).astype(jnp.bfloat16)
    b4 = jax.random.uniform(kb4, (out4,), minval=-bd4, maxval=bd4,
                            dtype=jnp.float32).astype(jnp.bfloat16)
    y4 = jax.block_until_ready(gated_linear(x4, w4, b4))
    assert y4.shape == (B4, out4)
    assert jnp.allclose(y4.astype(jnp.float32),
                        _ref(x4, w4, b4).astype(jnp.float32),
                        atol=5e-2, rtol=5e-2)

    # TODO(synk): the stochastic gate / dgate paths (build_gate / build_gate_dep)
    # are not translated; in the module's default state (gate is None),
    # apply_gate is the identity, which is what this kernel implements.
    print("KERNEL_OK")
</pallas_src>

<mosaic_0001>
module attributes {stable_mosaic.version = 11 : i64} {
  func.func @_linear_kernel_single_k(%arg0: i32, %arg1: i32, %arg2: i32, %arg3: memref<8x128xf32, #tpu.memory_space<vmem>>, %arg4: memref<128x128xf32, #tpu.memory_space<vmem>>, %arg5: memref<1x128xf32, #tpu.memory_space<vmem>>, %arg6: memref<8x128xf32, #tpu.memory_space<vmem>>) attributes {dimension_semantics = [#tpu.dimension_semantics<parallel>, #tpu.dimension_semantics<parallel>, #tpu.dimension_semantics<arbitrary>], iteration_bounds = array<i64: 1, 1, 1>, scalar_prefetch = 0 : i64, scratch_operands = 0 : i64, tpu.core_type = #tpu.core_type<tc>, window_params = [{transform_indices = @transform_0, window_bounds = array<i64: 8, 128>}, {transform_indices = @transform_1, window_bounds = array<i64: 128, 128>}, {transform_indices = @transform_2, window_bounds = array<i64: 1, 128>}, {transform_indices = @transform_3, window_bounds = array<i64: 8, 128>}]} {
    %c0 = arith.constant 0 : index
    %c0_0 = arith.constant 0 : index
    %0 = vector.load %arg3[%c0, %c0_0] : memref<8x128xf32, #tpu.memory_space<vmem>>, vector<8x128xf32>
    %c0_1 = arith.constant 0 : index
    %c0_2 = arith.constant 0 : index
    %1 = vector.load %arg4[%c0_1, %c0_2] : memref<128x128xf32, #tpu.memory_space<vmem>>, vector<128x128xf32>
    %cst = arith.constant dense<0.000000e+00> : vector<8x128xf32>
    %2 = tpu.matmul %0, %1, %cst {dimension_numbers = #tpu.dot_dimension_numbers<[1], [1], [0], [0], [0, 0, 1, 0], [], []>} : vector<8x128xf32>, vector<128x128xf32>, vector<8x128xf32> -> vector<8x128xf32>
    %c0_3 = arith.constant 0 : index
    %c0_4 = arith.constant 0 : index
    %3 = vector.load %arg5[%c0_3, %c0_4] : memref<1x128xf32, #tpu.memory_space<vmem>>, vector<1x128xf32>
    %4 = vector.broadcast %3 : vector<1x128xf32> to vector<8x128xf32>
    %5 = arith.addf %2, %4 : vector<8x128xf32>
    %c0_5 = arith.constant 0 : index
    %c0_6 = arith.constant 0 : index
    %6 = vector.load %arg6[%c0_5, %c0_6] : memref<8x128xf32, #tpu.memory_space<vmem>>, vector<8x128xf32>
    tpu.vector_store %arg6[%c0_5, %c0_6], %5 {strides = array<i32>} : memref<8x128xf32, #tpu.memory_space<vmem>>, vector<8x128xf32>,
    return
  }
  func.func @transform_0(%arg0: i32, %arg1: i32, %arg2: i32) -> (i32, i32) {
    %c0_i32 = arith.constant 0 : i32
    return %arg0, %arg2 : i32, i32
  }
  func.func @transform_1(%arg0: i32, %arg1: i32, %arg2: i32) -> (i32, i32) {
    %c0_i32 = arith.constant 0 : i32
    return %arg1, %arg2 : i32, i32
  }
  func.func @transform_2(%arg0: i32, %arg1: i32, %arg2: i32) -> (i32, i32) {
    %c0_i32 = arith.constant 0 : i32
    %c0_i32_0 = arith.constant 0 : i32
    return %c0_i32, %arg1 : i32, i32
  }
  func.func @transform_3(%arg0: i32, %arg1: i32, %arg2: i32) -> (i32, i32) {
    %c0_i32 = arith.constant 0 : i32
    return %arg0, %arg1 : i32, i32
  }
}

</mosaic_0001>

<llo_original>
// kernel: tpu_custom_call.1
$region0: #{tpu_custom_call.1}
  #allocation0 [shape = 'u32[]', space=smem, size = 0x4, offset = 0x4, fixed_abs, tag = 'smem constant byte address 0x4 - core index']
  #allocation1 [shape = 'u32[144,128]{1,0:T(1,128)}', space=vmem, size = 0x12000, scoped, tag = 'internal scratch']
  %s0 = inlined_call_operand.hbm [shape: f32[8,128], index: 0, kind: input, shape index: {}]
  %s1 = inlined_call_operand.hbm [shape: f32[128,128], index: 1, kind: input, shape index: {}]
  %s2 = inlined_call_operand.vmem [shape: f32[1,128], index: 2, kind: input, shape index: {}]
  %s3 = inlined_call_operand.hbm [shape: f32[8,128], index: 3, kind: output, shape index: {}]
  %s4 = sld [smem:[#allocation0]]
  $region30: #{tpu_custom_call.1} parent=0
    _
  %s6 = ssub.s32 1, %s4
  %s7 = scalar_select 0, %s6, %s4
  $region1: #{tpu_custom_call.1} parent=0
    #allocation2 [shape = 'u8[4096]{0}', space=vmem, size = 0x1000, scoped, tag = 'input window, operand 0, single buffered']
    #allocation3 [shape = 's32[1]{0}', space=sflag, size = 0x4, scoped, tag = 'scoped memory for tpu_custom_call.1']
    #allocation4 [shape = 's32[1]{0}', space=sflag, size = 0x4, scoped, tag = 'scoped memory for tpu_custom_call.1']
    #allocation5 [shape = 'u8[65536]{0}', space=vmem, size = 0x10000, scoped, tag = 'input window, operand 1, single buffered']
    #allocation6 [shape = 's32[1]{0}', space=sflag, size = 0x4, scoped, tag = 'scoped memory for tpu_custom_call.1']
    #allocation7 [shape = 'u8[4096]{0}', space=vmem, size = 0x1000, scoped, tag = 'output window, operand 0, single buffered']
    %8 = vsyncpa [#allocation3], 0
    %9 = vsyncpa [#allocation6], 0
    %10 = vsyncpa [#allocation4], 0
    // Predicated region
    $region2: #{tpu_custom_call.1} parent=1 // pred_check
      _
    $region3: #{tpu_custom_call.1} parent=1 // pred_check_branch
      %12 = sbr.rel (0) target = $region5
    $region4: #{tpu_custom_call.1} parent=1 // pred_region
      %s14 = ssub.s32 128, 128
      %15 = vsyncadd [#allocation3], %s14
      %s17 = sshll.u32 [#allocation2], 4
      %s18 = int_to_ptr.vmem [resolvable:$true] %s17
      %20 = dma.hbm_to_vmem [thread:$0]  %s0, 128, %s18, [#allocation3]
    $region5: #{tpu_custom_call.1} parent=1 // pred_fallthru
      _
    // Predicated region
    $region6: #{tpu_custom_call.1} parent=1 // pred_check
      _
    $region7: #{tpu_custom_call.1} parent=1 // pred_check_branch
      %22 = sbr.rel (0) target = $region9
    $region8: #{tpu_custom_call.1} parent=1 // pred_region
      %s24 = ssub.s32 2048, 2048
      %25 = vsyncadd [#allocation6], %s24
      %s26 = sshll.u32 [#allocation5], 4
      %s27 = int_to_ptr.vmem [resolvable:$true] %s26
      %32 = dma.hbm_to_vmem [thread:$0]  %s1, 2048, %s27, [#allocation6], 128, 128, 8
    $region9: #{tpu_custom_call.1} parent=1 // pred_fallthru
      _
    // Predicated region
    $region10: #{tpu_custom_call.1} parent=1 // pred_check
      _
    $region11: #{tpu_custom_call.1} parent=1 // pred_check_branch
      %34 = sbr.rel (0) target = $region13
    $region12: #{tpu_custom_call.1} parent=1 // pred_region
      _
    $region13: #{tpu_custom_call.1} parent=1 // pred_fallthru
      _
    // Predicated region
    $region14: #{tpu_custom_call.1} parent=1 // pred_check
      _
    $region15: #{tpu_custom_call.1} parent=1 // pred_check_branch
      %36 = sbr.rel (0) target = $region17
    $region16: #{tpu_custom_call.1} parent=1 // pred_region
      %37 = dma.done [#allocation3], 128
    $region17: #{tpu_custom_call.1} parent=1 // pred_fallthru
      _
    // Predicated region
    $region18: #{tpu_custom_call.1} parent=1 // pred_check
      _
    $region19: #{tpu_custom_call.1} parent=1 // pred_check_branch
      %39 = sbr.rel (0) target = $region21
    $region20: #{tpu_custom_call.1} parent=1 // pred_region
      %40 = dma.done [#allocation6], 2048
    $region21: #{tpu_custom_call.1} parent=1 // pred_fallthru
      _
    %v41 = vld [vmem:[#allocation2] sm:$0xff]
    %v42 = vld [vmem:[#allocation5] sm:$0xff]
    %v43 = vld [vmem:[#allocation5 + $0x8] sm:$0xff]
    %v44 = vld [vmem:[#allocation5 + $0x10] sm:$0xff]
    %v45 = vld [vmem:[#allocation5 + $0x18] sm:$0xff]
    %v46 = vld [vmem:[#allocation5 + $0x20] sm:$0xff]
    %v47 = vld [vmem:[#allocation5 + $0x28] sm:$0xff]
    %v48 = vld [vmem:[#allocation5 + $0x30] sm:$0xff]
    %v49 = vld [vmem:[#allocation5 + $0x38] sm:$0xff]
    %v50 = vld [vmem:[#allocation5 + $0x40] sm:$0xff]
    %v51 = vld [vmem:[#allocation5 + $0x48] sm:$0xff]
    %v52 = vld [vmem:[#allocation5 + $0x50] sm:$0xff]
    %v53 = vld [vmem:[#allocation5 + $0x58] sm:$0xff]
    %v54 = vld [vmem:[#allocation5 + $0x60] sm:$0xff]
    %v55 = vld [vmem:[#allocation5 + $0x68] sm:$0xff]
    %v56 = vld [vmem:[#allocation5 + $0x70] sm:$0xff]
    %v57 = vld [vmem:[#allocation5 + $0x78] sm:$0xff]
    %v58 = vld [vmem:[%s2] sm:$0x1]
    %v60 = vlaneseq
    %v61 = vshrl.u32 %v60, 7
    %v62 = vsub.s32 0, %v61
    %v63 = vrot.slane %v58, %v62
    %65 = vmatprep.subr.mxu0 0.0
    %66 = vmatpush1.xpose.msra.mxu0 %v57
    %67 = vmatprep.subr.mxu0 0.0
    %68 = vmatpush1.xpose.msra.mxu0 %v56
    %69 = vmatprep.subr.mxu0 0.0
    %70 = vmatpush1.xpose.msra.mxu0 %v55
    %71 = vmatprep.subr.mxu0 0.0
    %72 = vmatpush1.xpose.msra.mxu0 %v54
    %73 = vmatprep.subr.mxu0 0.0
    %74 = vmatpush1.xpose.msra.mxu0 %v53
    %75 = vmatprep.subr.mxu0 0.0
    %76 = vmatpush1.xpose.msra.mxu0 %v52
    %77 = vmatprep.subr.mxu0 0.0
    %78 = vmatpush1.xpose.msra.mxu0 %v51
    %79 = vmatprep.subr.mxu0 0.0
    %80 = vmatpush1.xpose.msra.mxu0 %v50
    %81 = vmatprep.subr.mxu0 0.0
    %82 = vmatpush1.xpose.msra.mxu0 %v49
    %83 = vmatprep.subr.mxu0 0.0
    %84 = vmatpush1.xpose.msra.mxu0 %v48
    %85 = vmatprep.subr.mxu0 0.0
    %86 = vmatpush1.xpose.msra.mxu0 %v47
    %87 = vmatprep.subr.mxu0 0.0
    %88 = vmatpush1.xpose.msra.mxu0 %v46
    %89 = vmatprep.subr.mxu0 0.0
    %90 = vmatpush1.xpose.msra.mxu0 %v45
    %91 = vmatprep.subr.mxu0 0.0
    %92 = vmatpush1.xpose.msra.mxu0 %v44
    %93 = vmatprep.subr.mxu0 0.0
    %94 = vmatpush1.xpose.msra.mxu0 %v43
    %95 = vmatprep.subr.mxu0 0.0
    %96 = vmatpush1.xpose.msra.mxu0 %v42
    %97 = vmatprep.subr.mxu0 0.0
    %98 = vmatpush2.xpose.msra.mxu0 0.0
    %99 = vmatprep.subr.mxu0 0.0
    %100 = vmatpush2.xpose.msra.mxu0 0.0
    %101 = vmatprep.subr.mxu0 0.0
    %102 = vmatpush2.xpose.msra.mxu0 0.0
    %103 = vmatprep.subr.mxu0 0.0
    %104 = vmatpush2.xpose.msra.mxu0 0.0
    %105 = vmatprep.subr.mxu0 0.0
    %106 = vmatpush2.xpose.msra.mxu0 0.0
    %107 = vmatprep.subr.mxu0 0.0
    %108 = vmatpush2.xpose.msra.mxu0 0.0
    %109 = vmatprep.subr.mxu0 0.0
    %110 = vmatpush2.xpose.msra.mxu0 0.0
    %111 = vmatprep.subr.mxu0 0.0
    %112 = vmatpush2.xpose.msra.mxu0 0.0
    %113 = vmatprep.subr.mxu0 0.0
    %114 = vmatpush2.xpose.msra.mxu0 0.0
    %115 = vmatprep.subr.mxu0 0.0
    %116 = vmatpush2.xpose.msra.mxu0 0.0
    %117 = vmatprep.subr.mxu0 0.0
    %118 = vmatpush2.xpose.msra.mxu0 0.0
    %119 = vmatprep.subr.mxu0 0.0
    %120 = vmatpush2.xpose.msra.mxu0 0.0
    %121 = vmatprep.subr.mxu0 0.0
    %122 = vmatpush2.xpose.msra.mxu0 0.0
    %123 = vmatprep.subr.mxu0 0.0
    %124 = vmatpush2.xpose.msra.mxu0 0.0
    %125 = vmatprep.subr.mxu0 0.0
    %126 = vmatpush2.xpose.msra.mxu0 0.0
    %127 = vmatprep.subr.mxu0 0.0
    %128 = vmatpush2.xpose.msra.mxu0 0.0
    %129 = vmatprep.mubr.f32.mxu0 0.0
    %130 = vmatmul.mubr.f32.gmra.mxu0 %v41
    %v131 = vpop.f32.mrf.mxu0
    %v132 = vadd.f32 %v63, %v131
    %v133 = vpop.f32.mrf.mxu0
    %134 = vdwg.mxu0
    %135 = vst [vmem:[#allocation7] sm:$0xff] %v132
    // Predicated region
    $region22: #{tpu_custom_call.1} parent=1 // pred_check
      _
    $region23: #{tpu_custom_call.1} parent=1 // pred_check_branch
      %137 = sbr.rel (0) target = $region25
    $region24: #{tpu_custom_call.1} parent=1 // pred_region
      %s139 = ssub.s32 128, 128
      %140 = vsyncadd [#allocation4], %s139
      %s142 = sshll.u32 [#allocation7], 4
      %s143 = int_to_ptr.vmem [resolvable:$true] %s142
      %145 = dma.vmem_to_hbm [thread:$0]  %s143, 128, %s3, [#allocation4]
    $region25: #{tpu_custom_call.1} parent=1 // pred_fallthru
      _
    // Predicated region
    $region26: #{tpu_custom_call.1} parent=1 // pred_check
      _
    $region27: #{tpu_custom_call.1} parent=1 // pred_check_branch
      %147 = sbr.rel (0) target = $region29
    $region28: #{tpu_custom_call.1} parent=1 // pred_region
      %148 = dma.done [#allocation4], 128
    $region29: #{tpu_custom_call.1} parent=1 // pred_fallthru
      _
    %149 = vsyncpa [#allocation3], 1
    %150 = vsyncpa [#allocation6], 1
    %151 = vsyncpa [#allocation4], 1

</llo_original>
